<compile_context>
chip_gen: v5e
topology: v5e:2x2
jax: 0.10.0
libtpu: 0.0.40
codegen_flags: <defaults>
</compile_context>

<pallas_src>
import functools
import math

import jax
import jax.numpy as jnp
from jax.experimental import pallas as pl
from jax.experimental.pallas import tpu as pltpu


# ----------------------------------------------------------------------------
# tile picking helper (largest divisor <= cap, lane/sublane aligned if possible)
# ----------------------------------------------------------------------------
def _pick_tile(dim, cap, align=128):
    if dim <= cap:
        return dim
    for a in (align, 8, 1):
        t = (cap // a) * a
        while t >= a:
            if dim % t == 0:
                return t
            t -= a
    return dim


def _itemsize(dt):
    return jnp.dtype(dt).itemsize


# ----------------------------------------------------------------------------
# Pallas kernels
# ----------------------------------------------------------------------------
def _make_linear_kernel(*, activation, fuse_residual, fuse_ln, eps):
    """Tiled matmul with fused bias / GELU / residual / LayerNorm epilogue."""

    def kernel(*refs):
        x_ref, w_ref, b_ref = refs[0], refs[1], refs[2]
        pos = 3
        res_ref = None
        if fuse_residual:
            res_ref = refs[pos]
            pos += 1
        g_ref = beta_ref = None
        if fuse_ln:
            g_ref, beta_ref = refs[pos], refs[pos + 1]
            pos += 2
        o_ref, acc_ref = refs[pos], refs[pos + 1]

        k = pl.program_id(2)

        @pl.when(k == 0)
        def _():
            acc_ref[...] = jnp.zeros_like(acc_ref)

        acc_ref[...] += jnp.dot(
            x_ref[...].astype(jnp.bfloat16),
            w_ref[...].astype(jnp.bfloat16),
            preferred_element_type=jnp.float32)

        @pl.when(k == pl.num_programs(2) - 1)
        def _():
            y = acc_ref[...] + b_ref[...]
            if activation == "gelu":
                # TODO(synk): BERT uses exact erf-GELU; tanh-approx GELU used
                # here since erf is not guaranteed to lower in Mosaic.
                y = 0.5 * y * (1.0 + jnp.tanh(
                    0.7978845608028654 * (y + 0.044715 * y * y * y)))
            if fuse_residual:
                y = y + res_ref[...].astype(jnp.float32)
            if fuse_ln:
                mean = jnp.mean(y, axis=-1, keepdims=True)
                var = jnp.mean(jnp.square(y - mean), axis=-1, keepdims=True)
                y = (y - mean) * jax.lax.rsqrt(var + eps)
                y = y * g_ref[...] + beta_ref[...]
            o_ref[...] = y.astype(o_ref.dtype)

    return kernel


def _layernorm_kernel(x_ref, g_ref, b_ref, o_ref, *, eps):
    x = x_ref[...].astype(jnp.float32)
    mean = jnp.mean(x, axis=-1, keepdims=True)
    var = jnp.mean(jnp.square(x - mean), axis=-1, keepdims=True)
    inv = jax.lax.rsqrt(var + eps)
    o_ref[...] = ((x - mean) * inv * g_ref[...] + b_ref[...]).astype(o_ref.dtype)


def _attention_kernel(qkv_ref, m_ref, o_ref, *, num_heads, scale):
    """One batch row per grid step.

    qkv_ref block: (1, S, 3H) — single contiguous DMA of the fused QKV slab.
    m_ref  block: (1, 1, S)   — additive mask bias.
    o_ref  block: (1, S, H)   — heads merged in the lane dim, one dense store.
    Heads are statically unrolled (num_heads is compile-time), so no dynamic
    lane-offset slicing is needed.
    """
    H3 = qkv_ref.shape[2]
    H = H3 // 3
    dh = H // num_heads
    mask = m_ref[0]  # (1, S), broadcast over query rows

    outs = []
    for h in range(num_heads):
        # fold the softmax scale into Q (S*dh mults instead of S*S)
        q = (qkv_ref[0, :, h * dh:(h + 1) * dh].astype(jnp.float32)
             * scale).astype(jnp.bfloat16)                              # (S, dh)
        k = qkv_ref[0, :, H + h * dh:H + (h + 1) * dh].astype(jnp.bfloat16)
        v = qkv_ref[0, :, 2 * H + h * dh:2 * H + (h + 1) * dh].astype(jnp.bfloat16)
        s = jax.lax.dot_general(q, k, (((1,), (1,)), ((), ())),
                                preferred_element_type=jnp.float32)     # (S, S)
        s = s + mask
        mx = jnp.max(s, axis=-1, keepdims=True)
        p = jnp.exp(s - mx)
        denom = jnp.sum(p, axis=-1, keepdims=True)
        p = p * pl.reciprocal(denom, approx=True)
        # TODO(synk): for long sequences (S >> 1K) switch to KV-blocked online
        # softmax (flash-style) so the (S, S) score matrix never materializes.
        outs.append(jnp.dot(p.astype(jnp.bfloat16), v,
                            preferred_element_type=jnp.float32))
    o_ref[0] = jnp.concatenate(outs, axis=-1).astype(o_ref.dtype)


# ----------------------------------------------------------------------------
# pallas_call wrappers
# ----------------------------------------------------------------------------
def pallas_linear(x, w, b, *, activation=None, residual=None, ln=None,
                  ln_eps=1e-12, out_dtype=jnp.bfloat16,
                  tm_cap=1024, tn_cap=512, tk_cap=1024):
    M, K = x.shape
    Kw, N = w.shape
    assert K == Kw

    w = w.astype(jnp.bfloat16)
    b = b.reshape(1, N).astype(jnp.float32)

    # Lane-pad narrow outputs (e.g. the num_labels decoder head) to a multiple
    # of 128 so stores stay unmasked; padding is sliced off in JAX. Never pad
    # when LayerNorm is fused (mean/var must run over the true row).
    n_pad = 0
    if ln is None and N % 128 != 0:
        n_pad = 128 * pl.cdiv(N, 128) - N
        w = jnp.pad(w, ((0, 0), (0, n_pad)))
        b = jnp.pad(b, ((0, 0), (0, n_pad)))
    Np = N + n_pad

    tk = _pick_tile(K, tk_cap, align=128)
    if ln is not None:
        tn = Np  # LayerNorm epilogue needs the full output row in one tile
    else:
        tn = _pick_tile(Np, tn_cap, align=128)

    # If the j axis collapses to a single step, keep >= 2 i-steps so both
    # TensorCores on v7x get work (megacore sharding over "parallel" axes).
    tm_cap_eff = tm_cap
    if tn == Np and M > 16:
        tm_cap_eff = min(tm_cap, max(16, M // 2))
    tm = _pick_tile(M, tm_cap_eff, align=16)

    assert M % tm == 0 and Np % tn == 0 and K % tk == 0
    grid = (M // tm, Np // tn, K // tk)

    in_specs = [pl.BlockSpec((tm, tk), lambda i, j, k: (i, k)),
                pl.BlockSpec((tk, tn), lambda i, j, k: (k, j)),
                pl.BlockSpec((1, tn), lambda i, j, k: (0, j))]
    args = [x, w, b]
    if residual is not None:
        in_specs.append(pl.BlockSpec((tm, tn), lambda i, j, k: (i, j)))
        args.append(residual)
    if ln is not None:
        g, bb = ln
        in_specs += [pl.BlockSpec((1, tn), lambda i, j, k: (0, j)),
                     pl.BlockSpec((1, tn), lambda i, j, k: (0, j))]
        args += [g.reshape(1, N).astype(jnp.float32),
                 bb.reshape(1, N).astype(jnp.float32)]

    # Explicit scoped-VMEM budget: double-buffered bf16 operands + bf16 output
    # (+ residual) + f32 accumulator, with headroom.  Capped under v7x's 64 MiB.
    est = (2 * (tm * tk + tk * tn) * 2
           + 2 * tm * tn * _itemsize(out_dtype)
           + (2 * tm * tn * _itemsize(residual.dtype) if residual is not None else 0)
           + tm * tn * 4
           + 8 * tn * 4)
    vmem_limit = int(min(60 * 1024 * 1024, max(32 * 1024 * 1024, est * 1.25)))

    kernel = _make_linear_kernel(activation=activation,
                                 fuse_residual=residual is not None,
                                 fuse_ln=ln is not None, eps=ln_eps)
    out = pl.pallas_call(
        kernel,
        out_shape=jax.ShapeDtypeStruct((M, Np), out_dtype),
        grid=grid,
        in_specs=in_specs,
        out_specs=pl.BlockSpec((tm, tn), lambda i, j, k: (i, j)),
        scratch_shapes=[pltpu.VMEM((tm, tn), jnp.float32)],
        compiler_params=pltpu.CompilerParams(
            dimension_semantics=("parallel", "parallel", "arbitrary"),
            vmem_limit_bytes=vmem_limit),
    )(*args)
    return out[:, :N] if n_pad else out


def pallas_layernorm(x, gamma, beta, *, eps=1e-12, out_dtype=jnp.bfloat16,
                     tm_cap=512):
    M, H = x.shape
    tm = _pick_tile(M, tm_cap, align=16)
    est = 2 * tm * H * (_itemsize(x.dtype) + _itemsize(out_dtype)) + 4 * H * 4
    vmem_limit = int(min(60 * 1024 * 1024, max(32 * 1024 * 1024, est * 1.25)))
    return pl.pallas_call(
        functools.partial(_layernorm_kernel, eps=eps),
        out_shape=jax.ShapeDtypeStruct((M, H), out_dtype),
        grid=(M // tm,),
        in_specs=[pl.BlockSpec((tm, H), lambda i: (i, 0)),
                  pl.BlockSpec((1, H), lambda i: (0, 0)),
                  pl.BlockSpec((1, H), lambda i: (0, 0))],
        out_specs=pl.BlockSpec((tm, H), lambda i: (i, 0)),
        compiler_params=pltpu.CompilerParams(
            dimension_semantics=("parallel",),
            vmem_limit_bytes=vmem_limit),
    )(x, gamma.reshape(1, H).astype(jnp.float32),
      beta.reshape(1, H).astype(jnp.float32))


def pallas_attention(qkv, mask_bias, num_heads):
    """qkv: (B, S, 3H) fused projections; mask_bias: (B, 1, S) additive bias.

    Grid is (B,): one contiguous (1, S, 3H) slab DMA per batch row feeds all
    heads; per-head work is statically unrolled in-kernel and the (S, H)
    output (heads merged on the lane dim) is written with one dense store.
    Avoids dh-wide (e.g. 64-lane) BlockSpecs that violate the (8,128) rule.
    """
    B, S, H3 = qkv.shape
    H = H3 // 3
    dh = H // num_heads
    scale = 1.0 / math.sqrt(dh)

    est = (2 * (S * H3 + S * H) * _itemsize(qkv.dtype)   # slab + out, double-buf
           + 2 * S * 4                                   # mask
           + 5 * S * S * 4                               # scores / probs working set
           + 6 * S * max(dh, 128) * 4)
    vmem_limit = int(min(60 * 1024 * 1024, max(32 * 1024 * 1024, est * 1.25)))

    return pl.pallas_call(
        functools.partial(_attention_kernel, num_heads=num_heads, scale=scale),
        out_shape=jax.ShapeDtypeStruct((B, S, H), qkv.dtype),
        grid=(B,),
        in_specs=[pl.BlockSpec((1, S, H3), lambda b: (b, 0, 0)),   # fused QKV slab
                  pl.BlockSpec((1, 1, S), lambda b: (b, 0, 0))],   # mask bias
        out_specs=pl.BlockSpec((1, S, H), lambda b: (b, 0, 0)),
        compiler_params=pltpu.CompilerParams(
            dimension_semantics=("parallel",),
            vmem_limit_bytes=vmem_limit),
    )(qkv, mask_bias)


# ----------------------------------------------------------------------------
# Deterministic parameter init (shapes implied by the PyTorch module)
# ----------------------------------------------------------------------------
def init_params(key, *, vocab, hidden, num_layers, intermediate, max_pos,
                type_vocab, num_labels, n_tokens):
    keys = list(jax.random.split(key, 8 + 10 * num_layers + 4))
    it = iter(keys)

    def dense(shape, dtype=jnp.bfloat16):
        # matmul weights stored bf16 (MXU-native); accumulation stays f32
        return (0.02 * jax.random.normal(next(it), shape, jnp.float32)).astype(dtype)

    p = {
        "word_emb": dense((vocab, hidden), jnp.float32),
        "pos_emb": dense((max_pos, hidden), jnp.float32),
        "type_emb": dense((type_vocab, hidden), jnp.float32),
        "emb_ln_g": jnp.ones((hidden,), jnp.float32),
        "emb_ln_b": jnp.zeros((hidden,), jnp.float32),
        "layers": [],
    }
    # PROMPTEmbedding: learned_embedding initialized from vocab (wte.weight[:n_tokens])
    p["learned_emb"] = p["word_emb"][:n_tokens]

    for _ in range(num_layers):
        layer = {
            # fused [q_w | k_w | v_w] projection, (H, 3H)
            "qkv_w": dense((hidden, 3 * hidden)),
            "qkv_b": jnp.zeros((3 * hidden,), jnp.float32),
            "o_w": dense((hidden, hidden)), "o_b": jnp.zeros((hidden,), jnp.float32),
            "attn_ln_g": jnp.ones((hidden,), jnp.float32),
            "attn_ln_b": jnp.zeros((hidden,), jnp.float32),
            "ffn_w1": dense((hidden, intermediate)),
            "ffn_b1": jnp.zeros((intermediate,), jnp.float32),
            "ffn_w2": dense((intermediate, hidden)),
            "ffn_b2": jnp.zeros((hidden,), jnp.float32),
            "ffn_ln_g": jnp.ones((hidden,), jnp.float32),
            "ffn_ln_b": jnp.zeros((hidden,), jnp.float32),
        }
        p["layers"].append(layer)

    # MLM head: transform (dense+gelu+LN) then replaced decoder Linear(hidden, num_labels)
    p["tr_w"] = dense((hidden, hidden))
    p["tr_b"] = jnp.zeros((hidden,), jnp.float32)
    p["tr_ln_g"] = jnp.ones((hidden,), jnp.float32)
    p["tr_ln_b"] = jnp.zeros((hidden,), jnp.float32)
    p["dec_w"] = dense((hidden, num_labels))
    p["dec_b"] = jnp.zeros((num_labels,), jnp.float32)
    return p


# ----------------------------------------------------------------------------
# Forward pass (embedding gathers in plain JAX; compute in Pallas kernels)
# ----------------------------------------------------------------------------
def prompt_embed(params, tokens, n_tokens, split1):
    """Reproduces PROMPTEmbedding.forward."""
    E = params["word_emb"]
    B = tokens.shape[0]
    e1 = jnp.take(E, tokens[:, 0:1], axis=0)                        # (B, 1, H)
    e2 = jnp.take(E, tokens[:, n_tokens + 1:n_tokens + 2], axis=0)  # (B, 1, H)
    e3 = jnp.take(E, tokens[:, n_tokens + 2:], axis=0)              # (B, S-n-2, H)
    learned = jnp.broadcast_to(params["learned_emb"][None],
                               (B, n_tokens, E.shape[1]))
    l1 = learned[:, :split1]
    l2 = learned[:, split1:]
    return jnp.concatenate([e1, l1, e2, l2, e3], axis=1)            # (B, S, H)


def eae_forward(params, input_ids, token_type_ids, input_mask, *,
                mask_id, n_tokens, split1, num_heads):
    B, S = input_ids.shape
    H = params["word_emb"].shape[1]

    # BertEmbeddings with word_embeddings replaced by PROMPTEmbedding
    x = prompt_embed(params, input_ids, n_tokens, split1)
    x = x + params["pos_emb"][None, :S, :]
    x = x + jnp.take(params["type_emb"], token_type_ids, axis=0)
    x2 = pallas_layernorm(x.reshape(B * S, H),
                          params["emb_ln_g"], params["emb_ln_b"])   # bf16 (B*S, H)

    # extended attention mask: (1 - mask) * -10000, broadcast over heads/queries
    mask_bias = ((1.0 - input_mask.astype(jnp.float32)) * -10000.0).reshape(B, 1, S)

    for layer in params["layers"]:
        # fused QKV projection: one matmul, one read of x2
        qkv = pallas_linear(x2, layer["qkv_w"], layer["qkv_b"])      # (B*S, 3H)
        ctx = pallas_attention(qkv.reshape(B, S, 3 * H), mask_bias, num_heads)
        ctx = ctx.reshape(B * S, H)
        # output projection with fused bias + residual + LayerNorm epilogue
        x2 = pallas_linear(ctx, layer["o_w"], layer["o_b"],
                           residual=x2,
                           ln=(layer["attn_ln_g"], layer["attn_ln_b"]))
        # feed-forward: dense+GELU, then dense with fused residual + LayerNorm
        h = pallas_linear(x2, layer["ffn_w1"], layer["ffn_b1"], activation="gelu")
        x2 = pallas_linear(h, layer["ffn_w2"], layer["ffn_b2"],
                           residual=x2,
                           ln=(layer["ffn_ln_g"], layer["ffn_ln_b"]))

    # MLM head on the masked position only (logits[:, mask_id, :] is all that's
    # used, and the head is strictly per-token) -> (B, H) instead of (B*S, H)
    xm = x2.reshape(B, S, H)[:, mask_id, :]                          # (B, H)
    t = pallas_linear(xm, params["tr_w"], params["tr_b"], activation="gelu",
                      ln=(params["tr_ln_g"], params["tr_ln_b"]))
    # decoder: tiny (B, num_labels) matmul; output lane-padded to 128 inside
    # pallas_linear and sliced back, so the store path stays dense.
    logits = pallas_linear(t, params["dec_w"], params["dec_b"],
                           out_dtype=jnp.float32)                    # (B, num_labels)
    return logits


# ----------------------------------------------------------------------------
if __name__ == "__main__":
    # small config consistent with the module's forward (dh = 128 -> lane-dense)
    B, S = 2, 16
    H, num_heads, num_layers, intermediate = 256, 2, 2, 512
    vocab, max_pos, type_vocab, num_labels = 64, 64, 2, 8
    n_tokens, split1, mask_id = 4, 2, 5

    key = jax.random.PRNGKey(0)
    pkey, ikey = jax.random.split(key)

    params = init_params(pkey, vocab=vocab, hidden=H, num_layers=num_layers,
                         intermediate=intermediate, max_pos=max_pos,
                         type_vocab=type_vocab, num_labels=num_labels,
                         n_tokens=n_tokens)

    input_ids = jax.random.randint(ikey, (B, S), 0, vocab, dtype=jnp.int32)
    token_type_ids = jnp.zeros((B, S), jnp.int32)
    input_mask = jnp.ones((B, S), jnp.int32)

    out = eae_forward(params, input_ids, token_type_ids, input_mask,
                      mask_id=mask_id, n_tokens=n_tokens, split1=split1,
                      num_heads=num_heads)
    out = jax.block_until_ready(out)
    assert out.shape == (B, num_labels), out.shape
    assert out.dtype == jnp.float32
    assert bool(jnp.all(jnp.isfinite(out)))
    print("KERNEL_OK")
</pallas_src>

<mosaic_0001>
module attributes {stable_mosaic.version = 11 : i64} {
  func.func @_layernorm_kernel(%arg0: i32, %arg1: memref<32x256xf32, #tpu.memory_space<vmem>>, %arg2: memref<1x256xf32, #tpu.memory_space<vmem>>, %arg3: memref<1x256xf32, #tpu.memory_space<vmem>>, %arg4: memref<32x256xbf16, #tpu.memory_space<vmem>>) attributes {dimension_semantics = [#tpu.dimension_semantics<parallel>], iteration_bounds = array<i64: 1>, scalar_prefetch = 0 : i64, scratch_operands = 0 : i64, tpu.core_type = #tpu.core_type<tc>, window_params = [{transform_indices = @transform_0, window_bounds = array<i64: 32, 256>}, {pipeline_mode = #tpu.pipeline_mode<synchronous>, transform_indices = @transform_1, window_bounds = array<i64: 1, 256>}, {pipeline_mode = #tpu.pipeline_mode<synchronous>, transform_indices = @transform_2, window_bounds = array<i64: 1, 256>}, {transform_indices = @transform_3, window_bounds = array<i64: 32, 256>}]} {
    %c0 = arith.constant 0 : index
    %c0_0 = arith.constant 0 : index
    %0 = vector.load %arg1[%c0, %c0_0] : memref<32x256xf32, #tpu.memory_space<vmem>>, vector<32x256xf32>
    %cst = arith.constant dense<0.000000e+00> : vector<32xf32>
    %1 = vector.multi_reduction <add>, %0, %cst [1] : vector<32x256xf32> to vector<32xf32>
    %2 = vector.shape_cast %1 : vector<32xf32> to vector<32x1xf32>
    %cst_1 = arith.constant 2.560000e+02 : f32
    %3 = vector.broadcast %cst_1 : f32 to vector<32x1xf32>
    %4 = arith.divf %2, %3 : vector<32x1xf32>
    %5 = vector.broadcast %4 : vector<32x1xf32> to vector<32x256xf32>
    %6 = arith.subf %0, %5 : vector<32x256xf32>
    %7 = arith.mulf %6, %6 : vector<32x256xf32>
    %cst_2 = arith.constant dense<0.000000e+00> : vector<32xf32>
    %8 = vector.multi_reduction <add>, %7, %cst_2 [1] : vector<32x256xf32> to vector<32xf32>
    %9 = vector.shape_cast %8 : vector<32xf32> to vector<32x1xf32>
    %cst_3 = arith.constant 2.560000e+02 : f32
    %10 = vector.broadcast %cst_3 : f32 to vector<32x1xf32>
    %11 = arith.divf %9, %10 : vector<32x1xf32>
    %cst_4 = arith.constant 9.99999996E-13 : f32
    %12 = vector.broadcast %cst_4 : f32 to vector<32x1xf32>
    %13 = arith.addf %11, %12 : vector<32x1xf32>
    %14 = math.rsqrt %13 : vector<32x1xf32>
    %15 = vector.broadcast %4 : vector<32x1xf32> to vector<32x256xf32>
    %16 = arith.subf %0, %15 : vector<32x256xf32>
    %17 = vector.broadcast %14 : vector<32x1xf32> to vector<32x256xf32>
    %18 = arith.mulf %16, %17 : vector<32x256xf32>
    %c0_5 = arith.constant 0 : index
    %c0_6 = arith.constant 0 : index
    %19 = vector.load %arg2[%c0_5, %c0_6] : memref<1x256xf32, #tpu.memory_space<vmem>>, vector<1x256xf32>
    %20 = vector.broadcast %19 : vector<1x256xf32> to vector<32x256xf32>
    %21 = arith.mulf %18, %20 : vector<32x256xf32>
    %c0_7 = arith.constant 0 : index
    %c0_8 = arith.constant 0 : index
    %22 = vector.load %arg3[%c0_7, %c0_8] : memref<1x256xf32, #tpu.memory_space<vmem>>, vector<1x256xf32>
    %23 = vector.broadcast %22 : vector<1x256xf32> to vector<32x256xf32>
    %24 = arith.addf %21, %23 : vector<32x256xf32>
    %25 = arith.truncf %24 : vector<32x256xf32> to vector<32x256xbf16>
    %c0_9 = arith.constant 0 : index
    %c0_10 = arith.constant 0 : index
    %26 = vector.load %arg4[%c0_9, %c0_10] : memref<32x256xbf16, #tpu.memory_space<vmem>>, vector<32x256xbf16>
    tpu.vector_store %arg4[%c0_9, %c0_10], %25 {strides = array<i32>} : memref<32x256xbf16, #tpu.memory_space<vmem>>, vector<32x256xbf16>,
    return
  }
  func.func @transform_0(%arg0: i32) -> (i32, i32) {
    %c0_i32 = arith.constant 0 : i32
    %c0_i32_0 = arith.constant 0 : i32
    return %arg0, %c0_i32 : i32, i32
  }
  func.func @transform_1(%arg0: i32) -> (i32, i32) {
    %c0_i32 = arith.constant 0 : i32
    %c0_i32_0 = arith.constant 0 : i32
    %c0_i32_1 = arith.constant 0 : i32
    return %c0_i32, %c0_i32_0 : i32, i32
  }
  func.func @transform_2(%arg0: i32) -> (i32, i32) {
    %c0_i32 = arith.constant 0 : i32
    %c0_i32_0 = arith.constant 0 : i32
    %c0_i32_1 = arith.constant 0 : i32
    return %c0_i32, %c0_i32_0 : i32, i32
  }
  func.func @transform_3(%arg0: i32) -> (i32, i32) {
    %c0_i32 = arith.constant 0 : i32
    %c0_i32_0 = arith.constant 0 : i32
    return %arg0, %c0_i32 : i32, i32
  }
}

</mosaic_0001>

<llo_original>
// kernel: tpu_custom_call.1
$region0: #{tpu_custom_call.1}
  #allocation0 [shape = 'u32[]', space=smem, size = 0x4, offset = 0x4, fixed_abs, tag = 'smem constant byte address 0x4 - core index']
  #allocation1 [shape = 'u32[72,128]{1,0:T(1,128)}', space=vmem, size = 0x9000, scoped, tag = 'internal scratch']
  %s0 = inlined_call_operand.hbm [shape: f32[32,256], index: 0, kind: input, shape index: {}]
  %s1 = inlined_call_operand.hbm [shape: f32[1,256], index: 1, kind: input, shape index: {}]
  %s2 = inlined_call_operand.hbm [shape: f32[1,256], index: 2, kind: input, shape index: {}]
  %s3 = inlined_call_operand.hbm [shape: bf16[32,256], index: 3, kind: output, shape index: {}]
  %s4 = sld [smem:[#allocation0]]
  $region34: #{tpu_custom_call.1} parent=0
    _
  %s6 = ssub.s32 1, %s4
  %s7 = scalar_select 0, %s6, %s4
  $region1: #{tpu_custom_call.1} parent=0
    #allocation2 [shape = 'u8[32768]{0}', space=vmem, size = 0x8000, scoped, tag = 'input window, operand 0, single buffered']
    #allocation3 [shape = 's32[1]{0}', space=sflag, size = 0x4, scoped, tag = 'scoped memory for tpu_custom_call.1']
    #allocation4 [shape = 's32[1]{0}', space=sflag, size = 0x4, scoped, tag = 'scoped memory for tpu_custom_call.1']
    #allocation5 [shape = 'u8[1024]{0}', space=vmem, size = 0x400, scoped, tag = 'input window, operand 1, single buffered']
    #allocation6 [shape = 's32[1]{0}', space=sflag, size = 0x4, scoped, tag = 'scoped memory for tpu_custom_call.1']
    #allocation7 [shape = 'u8[1024]{0}', space=vmem, size = 0x400, scoped, tag = 'input window, operand 2, single buffered']
    #allocation8 [shape = 'u8[16384]{0}', space=vmem, size = 0x4000, scoped, tag = 'output window, operand 0, single buffered']
    %8 = vsyncpa [#allocation3], 0
    %9 = vsyncpa [#allocation6], 0
    %10 = vsyncpa [#allocation4], 0
    // Predicated region
    $region2: #{tpu_custom_call.1} parent=1 // pred_check
      _
    $region3: #{tpu_custom_call.1} parent=1 // pred_check_branch
      %12 = sbr.rel (0) target = $region5
    $region4: #{tpu_custom_call.1} parent=1 // pred_region
      %14 = vsyncadd [#allocation3], 0
      %s15 = sshll.u32 %s0, 4
      %s16 = int_to_ptr.hbm [resolvable:$true] %s15
      %s17 = sshll.u32 [#allocation2], 4
      %s18 = int_to_ptr.vmem [resolvable:$true] %s17
      %23 = dma.hbm_to_vmem [thread:$0]  %s16, 1024, %s18, [#allocation3], 256, 256, 16
    $region5: #{tpu_custom_call.1} parent=1 // pred_fallthru
      _
    // Predicated region
    $region6: #{tpu_custom_call.1} parent=1 // pred_check
      _
    $region7: #{tpu_custom_call.1} parent=1 // pred_check_branch
      %25 = sbr.rel (0) target = $region9
    $region8: #{tpu_custom_call.1} parent=1 // pred_region
      %27 = vsyncadd [#allocation6], 0
      %s29 = sshll.u32 %s1, 4
      %s30 = int_to_ptr.hbm [resolvable:$true] %s29
      %s31 = sshll.u32 [#allocation5], 4
      %s32 = int_to_ptr.vmem [resolvable:$true] %s31
      %34 = dma.hbm_to_vmem [thread:$0]  %s30, 32, %s32, [#allocation6]
    $region9: #{tpu_custom_call.1} parent=1 // pred_fallthru
      _
    // Predicated region
    $region10: #{tpu_custom_call.1} parent=1 // pred_check
      _
    $region11: #{tpu_custom_call.1} parent=1 // pred_check_branch
      %36 = sbr.rel (0) target = $region13
    $region12: #{tpu_custom_call.1} parent=1 // pred_region
      %38 = vsyncadd [#allocation6], 0
      %s40 = sshll.u32 %s2, 4
      %s41 = int_to_ptr.hbm [resolvable:$true] %s40
      %s42 = sshll.u32 [#allocation7], 4
      %s43 = int_to_ptr.vmem [resolvable:$true] %s42
      %45 = dma.hbm_to_vmem [thread:$0]  %s41, 32, %s43, [#allocation6]
    $region13: #{tpu_custom_call.1} parent=1 // pred_fallthru
      _
    // Predicated region
    $region14: #{tpu_custom_call.1} parent=1 // pred_check
      _
    $region15: #{tpu_custom_call.1} parent=1 // pred_check_branch
      %47 = sbr.rel (0) target = $region17
    $region16: #{tpu_custom_call.1} parent=1 // pred_region
      %49 = dma.done [#allocation3], 1024
    $region17: #{tpu_custom_call.1} parent=1 // pred_fallthru
      _
    // Predicated region
    $region18: #{tpu_custom_call.1} parent=1 // pred_check
      _
    $region19: #{tpu_custom_call.1} parent=1 // pred_check_branch
      %51 = sbr.rel (0) target = $region21
    $region20: #{tpu_custom_call.1} parent=1 // pred_region
      %53 = dma.done [#allocation6], 32
    $region21: #{tpu_custom_call.1} parent=1 // pred_fallthru
      _
    // Predicated region
    $region22: #{tpu_custom_call.1} parent=1 // pred_check
      _
    $region23: #{tpu_custom_call.1} parent=1 // pred_check_branch
      %55 = sbr.rel (0) target = $region25
    $region24: #{tpu_custom_call.1} parent=1 // pred_region
      %57 = dma.done [#allocation6], 32
    $region25: #{tpu_custom_call.1} parent=1 // pred_fallthru
      _
    %v58 = vld [vmem:[#allocation2] sm:$0xff]
    %v59 = vld [vmem:[#allocation2 + $0x8] sm:$0xff]
    %v60 = vld [vmem:[#allocation2 + $0x10] sm:$0xff]
    %v61 = vld [vmem:[#allocation2 + $0x18] sm:$0xff]
    %v62 = vld [vmem:[#allocation2 + $0x20] sm:$0xff]
    %v63 = vld [vmem:[#allocation2 + $0x28] sm:$0xff]
    %v64 = vld [vmem:[#allocation2 + $0x30] sm:$0xff]
    %v65 = vld [vmem:[#allocation2 + $0x38] sm:$0xff]
    %v66 = vadd.f32 %v58, %v59
    %67 = vadd.xlane.f32.xlu0 %v66
    %v68 = vpop.xlane.xlu0 %67
    %v69 = vadd.f32 %v60, %v61
    %70 = vadd.xlane.f32.xlu0 %v69
    %v71 = vpop.xlane.xlu0 %70
    %v72 = vadd.f32 %v62, %v63
    %73 = vadd.xlane.f32.xlu0 %v72
    %v74 = vpop.xlane.xlu0 %73
    %v75 = vadd.f32 %v64, %v65
    %76 = vadd.xlane.f32.xlu0 %v75
    %v77 = vpop.xlane.xlu0 %76
    %v78 = vrcp.pop 256.0
    %v79 = vmul.f32 256.0, %v78
    %v80 = vsub.f32 1.0, %v79
    %v81 = vmul.f32 %v78, %v80
    %v82 = vadd.f32 %v78, %v81
    %vm83 = vweird.f32 %v78
    %v84 = vsel %vm83, %v78, %v82
    %v85 = vmul.f32 %v68, %v84
    %v86 = vmul.f32 %v71, %v84
    %v87 = vmul.f32 %v74, %v84
    %v88 = vmul.f32 %v77, %v84
    %v89 = vsub.f32 %v58, %v85
    %v90 = vsub.f32 %v59, %v85
    %v91 = vsub.f32 %v60, %v86
    %v92 = vsub.f32 %v61, %v86
    %v93 = vsub.f32 %v62, %v87
    %v94 = vsub.f32 %v63, %v87
    %v95 = vsub.f32 %v64, %v88
    %v96 = vsub.f32 %v65, %v88
    %v97 = vmul.f32 %v89, %v89
    %v98 = vmul.f32 %v90, %v90
    %v99 = vmul.f32 %v91, %v91
    %v100 = vmul.f32 %v92, %v92
    %v101 = vmul.f32 %v93, %v93
    %v102 = vmul.f32 %v94, %v94
    %v103 = vmul.f32 %v95, %v95
    %v104 = vmul.f32 %v96, %v96
    %v105 = vadd.f32 %v97, %v98
    %106 = vadd.xlane.f32.xlu0 %v105
    %v107 = vpop.xlane.xlu0 %106
    %v108 = vadd.f32 %v99, %v100
    %109 = vadd.xlane.f32.xlu0 %v108
    %v110 = vpop.xlane.xlu0 %109
    %v111 = vadd.f32 %v101, %v102
    %112 = vadd.xlane.f32.xlu0 %v111
    %v113 = vpop.xlane.xlu0 %112
    %v114 = vadd.f32 %v103, %v104
    %115 = vadd.xlane.f32.xlu0 %v114
    %v116 = vpop.xlane.xlu0 %115
    %v117 = vmul.f32 %v107, %v84
    %v118 = vmul.f32 %v110, %v84
    %v119 = vmul.f32 %v113, %v84
    %v120 = vmul.f32 %v116, %v84
    %v121 = vadd.f32 %v117, 1e-12
    %v122 = vadd.f32 %v118, 1e-12
    %v123 = vadd.f32 %v119, 1e-12
    %v124 = vadd.f32 %v120, 1e-12
    %v125 = vrsqrt.pop %v121
    %v126 = vmul.f32 %v125, %v121
    %v127 = vmul.f32 %v126, %v125
    %v128 = vmul.f32 0.5, %v127
    %v129 = vsub.f32 1.5, %v128
    %v130 = vmul.f32 %v125, %v129
    %vm131 = vweird.f32 %v121
    %vm132 = vweird.f32 %v125
    %vm133 = vmor %vm131, %vm132
    %v134 = vsel %vm133, %v125, %v130
    %v135 = vrsqrt.pop %v122
    %v136 = vmul.f32 %v135, %v122
    %v137 = vmul.f32 %v136, %v135
    %v138 = vmul.f32 0.5, %v137
    %v139 = vsub.f32 1.5, %v138
    %v140 = vmul.f32 %v135, %v139
    %vm141 = vweird.f32 %v122
    %vm142 = vweird.f32 %v135
    %vm143 = vmor %vm141, %vm142
    %v144 = vsel %vm143, %v135, %v140
    %v145 = vrsqrt.pop %v123
    %v146 = vmul.f32 %v145, %v123
    %v147 = vmul.f32 %v146, %v145
    %v148 = vmul.f32 0.5, %v147
    %v149 = vsub.f32 1.5, %v148
    %v150 = vmul.f32 %v145, %v149
    %vm151 = vweird.f32 %v123
    %vm152 = vweird.f32 %v145
    %vm153 = vmor %vm151, %vm152
    %v154 = vsel %vm153, %v145, %v150
    %v155 = vrsqrt.pop %v124
    %v156 = vmul.f32 %v155, %v124
    %v157 = vmul.f32 %v156, %v155
    %v158 = vmul.f32 0.5, %v157
    %v159 = vsub.f32 1.5, %v158
    %v160 = vmul.f32 %v155, %v159
    %vm161 = vweird.f32 %v124
    %vm162 = vweird.f32 %v155
    %vm163 = vmor %vm161, %vm162
    %v164 = vsel %vm163, %v155, %v160
    %v165 = vmul.f32 %v89, %v134
    %v166 = vmul.f32 %v90, %v134
    %v167 = vmul.f32 %v91, %v144
    %v168 = vmul.f32 %v92, %v144
    %v169 = vmul.f32 %v93, %v154
    %v170 = vmul.f32 %v94, %v154
    %v171 = vmul.f32 %v95, %v164
    %v172 = vmul.f32 %v96, %v164
    %v173 = vld [vmem:[#allocation5] sm:$0x3]
    %v175 = vperm.slane %v173, 0
    %v176 = vperm.slane %v173, 1
    %v179 = vmul.f32 %v165, %v175
    %v180 = vmul.f32 %v166, %v176
    %v181 = vmul.f32 %v167, %v175
    %v182 = vmul.f32 %v168, %v176
    %v183 = vmul.f32 %v169, %v175
    %v184 = vmul.f32 %v170, %v176
    %v185 = vmul.f32 %v171, %v175
    %v186 = vmul.f32 %v172, %v176
    %v187 = vld [vmem:[#allocation7] sm:$0x3]
    %v189 = vperm.slane %v187, 0
    %v190 = vperm.slane %v187, 1
    %v193 = vadd.f32 %v179, %v189
    %v194 = vadd.f32 %v180, %v190
    %v195 = vadd.f32 %v181, %v189
    %v196 = vadd.f32 %v182, %v190
    %v197 = vadd.f32 %v183, %v189
    %v198 = vadd.f32 %v184, %v190
    %v199 = vadd.f32 %v185, %v189
    %v200 = vadd.f32 %v186, %v190
    %v201 = vpack.c.bf16 %v194, %v193
    %v202 = vpack.c.bf16 %v196, %v195
    %v203 = vpack.c.bf16 %v198, %v197
    %v204 = vpack.c.bf16 %v200, %v199
    %205 = vst [vmem:[#allocation8] sm:$0xff] %v201
    %206 = vst [vmem:[#allocation8 + $0x8] sm:$0xff] %v202
    %207 = vst [vmem:[#allocation8 + $0x10] sm:$0xff] %v203
    %208 = vst [vmem:[#allocation8 + $0x18] sm:$0xff] %v204
    // Predicated region
    $region26: #{tpu_custom_call.1} parent=1 // pred_check
      _
    $region27: #{tpu_custom_call.1} parent=1 // pred_check_branch
      %210 = sbr.rel (0) target = $region29
    $region28: #{tpu_custom_call.1} parent=1 // pred_region
      %212 = vsyncadd [#allocation4], 0
      %s213 = sshll.u32 [#allocation8], 4
      %s214 = int_to_ptr.vmem [resolvable:$true] %s213
      %s215 = sshll.u32 %s3, 4
      %s216 = int_to_ptr.hbm [resolvable:$true] %s215
      %221 = dma.vmem_to_hbm [thread:$0]  %s214, 512, %s216, [#allocation4], 128, 128, 8
    $region29: #{tpu_custom_call.1} parent=1 // pred_fallthru
      _
    // Predicated region
    $region30: #{tpu_custom_call.1} parent=1 // pred_check
      _
    $region31: #{tpu_custom_call.1} parent=1 // pred_check_branch
      %223 = sbr.rel (0) target = $region33
    $region32: #{tpu_custom_call.1} parent=1 // pred_region
      %225 = dma.done [#allocation4], 512
    $region33: #{tpu_custom_call.1} parent=1 // pred_fallthru
      _
    %226 = vsyncpa [#allocation3], 1
    %227 = vsyncpa [#allocation6], 1
    %228 = vsyncpa [#allocation4], 1

</llo_original>
